<compile_context>
chip_gen: v6e
topology: v6e:2x2x1
jax: 0.10.0
libtpu: 0.0.40
codegen_flags: <defaults>
</compile_context>

<pallas_src>
import math

import jax
import jax.numpy as jnp
from jax.experimental import pallas as pl
from jax.experimental.pallas import tpu as pltpu

_LANE = 128
_BLOCK_BYTES = 2 * 1024 * 1024  # per x-block cap (in+out double-buffered ~ 8 MiB peak)


def _scale_mul_kernel(scale_ref, x_ref, o_ref):
    # scale_ref: (r_tile, 1) or (1, l_tile) float32; x_ref / o_ref: 2-D tile of x.
    o_ref[...] = (scale_ref[...] * x_ref[...]).astype(o_ref.dtype)


def _sublane_align(dtype) -> int:
    """Native sublane tile height for a dtype (8 for f32, 16 for bf16, 32 for int8)."""
    return max(8, 32 // max(jnp.dtype(dtype).itemsize, 1))


def _pick_tile(dim: int, align: int, cap: int) -> int:
    """Full dim if it fits the cap (always a legal block shape), else the largest
    `align`-multiple within the cap; trailing partial blocks come from a cdiv grid."""
    if dim <= cap:
        return dim
    return max(align, (cap // align) * align)


def _rowscale_2d(x2, scale_col):
    """out = scale_col * x2, with x2: (R, T) and scale_col: (R, 1) float32."""
    R, T = x2.shape
    itemsize = jnp.dtype(x2.dtype).itemsize
    t_tile = _pick_tile(T, _LANE, 2048)
    r_align = _sublane_align(x2.dtype)
    r_cap = max(r_align, _BLOCK_BYTES // (t_tile * itemsize))
    r_tile = _pick_tile(R, r_align, r_cap)
    # T innermost: the scale block index (ri, 0) is constant across the inner loop,
    # so its DMA is skipped on revisits.
    grid = (pl.cdiv(R, r_tile), pl.cdiv(T, t_tile))
    return pl.pallas_call(
        _scale_mul_kernel,
        out_shape=jax.ShapeDtypeStruct((R, T), x2.dtype),
        grid=grid,
        in_specs=[
            pl.BlockSpec((r_tile, 1), lambda ri, ti: (ri, 0)),
            pl.BlockSpec((r_tile, t_tile), lambda ri, ti: (ri, ti)),
        ],
        out_specs=pl.BlockSpec((r_tile, t_tile), lambda ri, ti: (ri, ti)),
        compiler_params=pltpu.CompilerParams(
            dimension_semantics=("parallel", "parallel"),
        ),
    )(scale_col, x2)


def _colscale_2d(x2, scale_row):
    """out = scale_row * x2, with x2: (B, L) and scale_row: (1, L) float32."""
    B, L = x2.shape
    itemsize = jnp.dtype(x2.dtype).itemsize
    l_tile = _pick_tile(L, _LANE, 2048)
    b_align = _sublane_align(x2.dtype)
    b_cap = max(b_align, _BLOCK_BYTES // (l_tile * itemsize))
    b_tile = _pick_tile(B, b_align, b_cap)
    # B innermost: the scale block index (0, lj) is constant across the inner loop.
    grid = (pl.cdiv(L, l_tile), pl.cdiv(B, b_tile))
    return pl.pallas_call(
        _scale_mul_kernel,
        out_shape=jax.ShapeDtypeStruct((B, L), x2.dtype),
        grid=grid,
        in_specs=[
            pl.BlockSpec((1, l_tile), lambda lj, bi: (0, lj)),
            pl.BlockSpec((b_tile, l_tile), lambda lj, bi: (bi, lj)),
        ],
        out_specs=pl.BlockSpec((b_tile, l_tile), lambda lj, bi: (bi, lj)),
        compiler_params=pltpu.CompilerParams(
            dimension_semantics=("parallel", "parallel"),
        ),
    )(scale_row, x2)


def layer_scale(x, scale, boost: float = 5.0):
    """out = boost * scale[:, None] * x, for x of shape (..., C, T), scale of shape (C,)."""
    *lead, C, T = x.shape
    assert scale.shape == (C,), (scale.shape, C)
    B = math.prod(lead) if lead else 1
    # Fold the scalar boost into the (C,)-sized scale on the host.
    scale_eff = scale.astype(jnp.float32) * jnp.float32(boost)

    if T >= _LANE:
        # Lane-dense over time: per-row scale column of length B*C (free reshape of x).
        x2 = x.reshape(B * C, T)
        scale_col = jnp.tile(scale_eff, B).reshape(B * C, 1)
        out2 = _rowscale_2d(x2, scale_col)
    else:
        # Short time axis: flatten (C, T) into one dense lane axis of length C*T.
        x2 = x.reshape(B, C * T)
        scale_row = jnp.repeat(scale_eff, T).reshape(1, C * T)
        out2 = _colscale_2d(x2, scale_row)
    return out2.reshape(x.shape)


if __name__ == "__main__":
    # Module config (matches PyTorch __init__ defaults).
    channels, init, boost = 4, 0.1, 5.0
    # Deterministic parameter init, exactly as in the module: scale[:] = init / boost.
    scale = jnp.full((channels,), init / boost, dtype=jnp.float32)

    # Deterministic example input (B, C, T) — small, exercises the short-T path.
    B, T = 2, 16
    key = jax.random.PRNGKey(0)
    x = jax.random.normal(key, (B, channels, T), dtype=jnp.float32)

    out = jax.block_until_ready(layer_scale(x, scale, boost=boost))
    ref = boost * scale[:, None] * x
    assert out.shape == x.shape and out.dtype == x.dtype
    assert jnp.allclose(out, ref, atol=1e-6, rtol=1e-6), "mismatch (short-T path)"

    # Also exercise the lane-dense row-scale path, with a non-multiple-of-8 row count.
    C2, B2, T2 = 6, 3, 256
    k1, k2 = jax.random.split(key)
    scale2 = jax.random.normal(k1, (C2,), dtype=jnp.float32) * 0.02
    x2 = jax.random.normal(k2, (B2, C2, T2), dtype=jnp.float32)
    out2 = jax.block_until_ready(layer_scale(x2, scale2, boost=boost))
    ref2 = boost * scale2[:, None] * x2
    assert jnp.allclose(out2, ref2, atol=1e-6, rtol=1e-6), "mismatch (row-scale path)"

    print("KERNEL_OK")
</pallas_src>

<mosaic_0001>
module attributes {stable_mosaic.version = 11 : i64} {
  func.func @_scale_mul_kernel(%arg0: i32, %arg1: i32, %arg2: memref<1x64xf32, #tpu.memory_space<vmem>>, %arg3: memref<2x64xf32, #tpu.memory_space<vmem>>, %arg4: memref<2x64xf32, #tpu.memory_space<vmem>>) attributes {dimension_semantics = [#tpu.dimension_semantics<parallel>, #tpu.dimension_semantics<parallel>], iteration_bounds = array<i64: 1, 1>, scalar_prefetch = 0 : i64, scratch_operands = 0 : i64, tpu.core_type = #tpu.core_type<tc>, window_params = [{transform_indices = @transform_0, window_bounds = array<i64: 1, 64>}, {transform_indices = @transform_1, window_bounds = array<i64: 2, 64>}, {transform_indices = @transform_2, window_bounds = array<i64: 2, 64>}]} {
    %c0 = arith.constant 0 : index
    %c0_0 = arith.constant 0 : index
    %0 = vector.load %arg2[%c0, %c0_0] : memref<1x64xf32, #tpu.memory_space<vmem>>, vector<1x64xf32>
    %c0_1 = arith.constant 0 : index
    %c0_2 = arith.constant 0 : index
    %1 = vector.load %arg3[%c0_1, %c0_2] : memref<2x64xf32, #tpu.memory_space<vmem>>, vector<2x64xf32>
    %2 = vector.broadcast %0 : vector<1x64xf32> to vector<2x64xf32>
    %3 = arith.mulf %2, %1 : vector<2x64xf32>
    %c0_3 = arith.constant 0 : index
    %c0_4 = arith.constant 0 : index
    %4 = vector.load %arg4[%c0_3, %c0_4] : memref<2x64xf32, #tpu.memory_space<vmem>>, vector<2x64xf32>
    tpu.vector_store %arg4[%c0_3, %c0_4], %3 {strides = array<i32>} : memref<2x64xf32, #tpu.memory_space<vmem>>, vector<2x64xf32>,
    return
  }
  func.func @transform_0(%arg0: i32, %arg1: i32) -> (i32, i32) {
    %c0_i32 = arith.constant 0 : i32
    %c0_i32_0 = arith.constant 0 : i32
    return %c0_i32, %arg0 : i32, i32
  }
  func.func @transform_1(%arg0: i32, %arg1: i32) -> (i32, i32) {
    %c0_i32 = arith.constant 0 : i32
    return %arg1, %arg0 : i32, i32
  }
  func.func @transform_2(%arg0: i32, %arg1: i32) -> (i32, i32) {
    %c0_i32 = arith.constant 0 : i32
    return %arg1, %arg0 : i32, i32
  }
}

</mosaic_0001>

<llo_original>
// kernel: tpu_custom_call.1
$region0: #{tpu_custom_call.1}
  #allocation0 [shape = 'u32[]', space=smem, size = 0x4, offset = 0x4, fixed_abs, tag = 'smem constant byte address 0x4 - core index']
  #allocation1 [shape = 'u32[144,128]{1,0:T(1,128)}', space=vmem, size = 0x12000, scoped, tag = 'internal scratch']
  %s0 = inlined_call_operand.hbm [shape: f32[1,64], index: 0, kind: input, shape index: {}]
  %s1 = inlined_call_operand.hbm [shape: f32[2,64], index: 1, kind: input, shape index: {}]
  %s2 = inlined_call_operand.hbm [shape: f32[2,64], index: 2, kind: output, shape index: {}]
  %s3 = sld [smem:[#allocation0]]
  $region26: #{tpu_custom_call.1} parent=0
    _
  %s5 = ssub.s32 1, %s3
  %s6 = scalar_select 0, %s5, %s3
  $region1: #{tpu_custom_call.1} parent=0
    #allocation2 [shape = 'u8[512]{0}', space=vmem, size = 0x400, scoped, tag = 'input window, operand 0, single buffered']
    #allocation3 [shape = 's32[1]{0}', space=sflag, size = 0x4, scoped, tag = 'scoped memory for tpu_custom_call.1']
    #allocation4 [shape = 's32[1]{0}', space=sflag, size = 0x4, scoped, tag = 'scoped memory for tpu_custom_call.1']
    #allocation5 [shape = 'u8[1024]{0}', space=vmem, size = 0x400, scoped, tag = 'input window, operand 1, single buffered']
    #allocation6 [shape = 's32[1]{0}', space=sflag, size = 0x4, scoped, tag = 'scoped memory for tpu_custom_call.1']
    #allocation7 [shape = 'u8[1024]{0}', space=vmem, size = 0x400, scoped, tag = 'output window, operand 0, single buffered']
    %7 = vsyncpa [#allocation3], 0
    %8 = vsyncpa [#allocation6], 0
    %9 = vsyncpa [#allocation4], 0
    // Predicated region
    $region2: #{tpu_custom_call.1} parent=1 // pred_check
      _
    $region3: #{tpu_custom_call.1} parent=1 // pred_check_branch
      %11 = sbr.rel (0) target = $region5
    $region4: #{tpu_custom_call.1} parent=1 // pred_region
      %s13 = ssub.s32 16, 16
      %14 = vsyncadd [#allocation3], %s13
      %s16 = sshll.u32 [#allocation2], 4
      %s17 = int_to_ptr.vmem [resolvable:$true] %s16
      %19 = dma.hbm_to_vmem [thread:$0]  %s0, 16, %s17, [#allocation3]
    $region5: #{tpu_custom_call.1} parent=1 // pred_fallthru
      _
    // Predicated region
    $region6: #{tpu_custom_call.1} parent=1 // pred_check
      _
    $region7: #{tpu_custom_call.1} parent=1 // pred_check_branch
      %21 = sbr.rel (0) target = $region9
    $region8: #{tpu_custom_call.1} parent=1 // pred_region
      %s23 = ssub.s32 32, 32
      %24 = vsyncadd [#allocation6], %s23
      %s26 = sshll.u32 [#allocation5], 4
      %s27 = int_to_ptr.vmem [resolvable:$true] %s26
      %29 = dma.hbm_to_vmem [thread:$0]  %s1, 32, %s27, [#allocation6]
    $region9: #{tpu_custom_call.1} parent=1 // pred_fallthru
      _
    // Predicated region
    $region10: #{tpu_custom_call.1} parent=1 // pred_check
      _
    $region11: #{tpu_custom_call.1} parent=1 // pred_check_branch
      %31 = sbr.rel (0) target = $region13
    $region12: #{tpu_custom_call.1} parent=1 // pred_region
      %32 = dma.done [#allocation3], 16
    $region13: #{tpu_custom_call.1} parent=1 // pred_fallthru
      _
    // Predicated region
    $region14: #{tpu_custom_call.1} parent=1 // pred_check
      _
    $region15: #{tpu_custom_call.1} parent=1 // pred_check_branch
      %34 = sbr.rel (0) target = $region17
    $region16: #{tpu_custom_call.1} parent=1 // pred_region
      %35 = dma.done [#allocation6], 32
    $region17: #{tpu_custom_call.1} parent=1 // pred_fallthru
      _
    %v36 = vld [vmem:[#allocation2] sm:$0x1]
    %v37 = vld [vmem:[#allocation5] sm:$0x3]
    %v39 = vlaneseq
    %v40 = vshrl.u32 %v39, 7
    %v41 = vsub.s32 0, %v40
    %v42 = vrot.slane %v36, %v41
    %v44 = vmul.f32 %v42, %v37
    %vm45 = vcmask 517120
    %46 = vst.msk [vmem:[#allocation7] sm:$0x3] %vm45, %v44
    // Predicated region
    $region18: #{tpu_custom_call.1} parent=1 // pred_check
      _
    $region19: #{tpu_custom_call.1} parent=1 // pred_check_branch
      %48 = sbr.rel (0) target = $region21
    $region20: #{tpu_custom_call.1} parent=1 // pred_region
      %s50 = ssub.s32 32, 32
      %51 = vsyncadd [#allocation4], %s50
      %s53 = sshll.u32 [#allocation7], 4
      %s54 = int_to_ptr.vmem [resolvable:$true] %s53
      %56 = dma.vmem_to_hbm [thread:$0]  %s54, 32, %s2, [#allocation4]
    $region21: #{tpu_custom_call.1} parent=1 // pred_fallthru
      _
    // Predicated region
    $region22: #{tpu_custom_call.1} parent=1 // pred_check
      _
    $region23: #{tpu_custom_call.1} parent=1 // pred_check_branch
      %58 = sbr.rel (0) target = $region25
    $region24: #{tpu_custom_call.1} parent=1 // pred_region
      %59 = dma.done [#allocation4], 32
    $region25: #{tpu_custom_call.1} parent=1 // pred_fallthru
      _
    %60 = vsyncpa [#allocation3], 1
    %61 = vsyncpa [#allocation6], 1
    %62 = vsyncpa [#allocation4], 1

</llo_original>
